<compile_context>
chip_gen: v7x
topology: tpu7x:2x2x1
jax: 0.10.0
libtpu: 0.0.40
codegen_flags: <defaults>
</compile_context>

<pallas_src>
import functools

import jax
import jax.numpy as jnp
from jax import lax
from jax.experimental import pallas as pl
from jax.experimental.pallas import tpu as pltpu


def _round_up(x, m):
    return (x + m - 1) // m * m


def _tpu_generation():
    """Per-generation tuning: (target x-block bytes, vmem_limit_bytes, tensorcores)."""
    try:
        kind = jax.devices()[0].device_kind.lower()
    except Exception:
        kind = ""
    if "v7" in kind:
        # 64 MiB physical VMEM, 3.2 TB/s HBM, 2 TensorCores per chip.
        return 4 << 20, 48 << 20, 2
    if "v5 lite" in kind or "v5e" in kind or "v5litepod" in kind:
        # ~0.8 TB/s HBM: roofline reached with smaller blocks; keep scoped limit at 32 MiB.
        return 1 << 20, 32 << 20, 1
    if "v6" in kind:
        return 2 << 20, 64 << 20, 1
    # Unknown chip: conservative defaults.
    return 2 << 20, 32 << 20, 1


def _pick_block_b(B, row_bytes_padded, target_bytes, data_budget_bytes, num_cores):
    """Batch rows per grid step.

    Grows the block until either the per-generation target block size or the
    (lane-padding-aware) VMEM data budget is reached.  Budget assumes in+out
    blocks, double-buffered => 4 copies of the x block live at once.
    """
    tb_vmem = max(1, data_budget_bytes // (4 * row_bytes_padded))
    tb_tgt = max(1, target_bytes // row_bytes_padded)
    tb = min(tb_vmem, tb_tgt, B)
    if num_cores > 1 and B >= 2 * 8:
        # Keep >= num_cores grid steps so the "parallel" axis shards across TCs (v7x).
        tb = min(tb, pl.cdiv(B, num_cores))
    if tb < B:
        # Sub-full blocks must be sublane-aligned; full-B blocks are exempt.
        tb = max(8, (tb // 8) * 8)
        if tb > B:
            tb = B
    return tb


# --------------------------------------------------------------------------
# Primary kernel: lane-dense flat slab, D_out == 1 (attention pooling case).
# --------------------------------------------------------------------------
def _attention_flat_kernel(x_ref, wblk_ref, wb_ref, vexp_ref, vb_ref, o_ref, *, inv_dup):
    # x_ref   : (Tb, S*D_in)        lane-dense slab of Tb batch rows
    # wblk_ref: (S*D_in, S*D_mid)   kron(I_S, W^T)  (block-diagonal first Linear)
    # wb_ref  : (1, S*D_mid)        W bias tiled S times
    # vexp_ref: (S*D_mid, S*D_in)   kron(I_S, v (x) 1_{1 x D_in}) -> lane-expanded scores
    # vb_ref  : (1, 1)              V bias
    # o_ref   : (Tb, S*D_in)
    # inv_dup : 1 / D_in (compensates the D_in duplicated columns in the lane sum)
    x = x_ref[...]

    # First Linear + tanh: one lane-dense MXU GEMM for the whole slab.
    att = jnp.tanh(
        jnp.dot(x, wblk_ref[...], preferred_element_type=jnp.float32) + wb_ref[...]
    )                                                       # (Tb, S*D_mid)

    # Second Linear, lane-expanded: score[b, s*D_in + d] == V(att[b, s]) for all d,
    # so the gate can be applied with a plain VPU multiply (no relayout needed).
    score = (
        jnp.dot(att, vexp_ref[...], preferred_element_type=jnp.float32) + vb_ref[...]
    )                                                       # (Tb, S*D_in)

    # Numerically stable softmax over the sequence axis == lane reduction per row
    # (every lane group of D_in holds identical copies of its score).
    m = jnp.max(score, axis=-1, keepdims=True)              # (Tb, 1)
    e = jnp.exp(score - m)
    denom = jnp.sum(e, axis=-1, keepdims=True) * inv_dup    # == sum_s exp(score_s - m)
    inv = pl.reciprocal(denom, approx=True)                 # EUP estimate (no VPU divide)
    inv = inv * (2.0 - denom * inv)                         # one Newton step -> f32 accuracy

    # context_vector = attention_weights * features ; lane-dense, unmasked store.
    o_ref[...] = ((e * inv) * x).astype(o_ref.dtype)


# --------------------------------------------------------------------------
# Fallback kernel: 3-D blocks (general D_out, or kron weights too large).
# --------------------------------------------------------------------------
def _attention_3d_kernel(x_ref, ww_ref, wb_ref, vw_ref, vb_ref, o_ref, *, d_out):
    tb, s, d_in = x_ref.shape
    d_mid = ww_ref.shape[1]
    x3 = x_ref[...]

    if s % 8 == 0:
        # Layout-free leading-dim collapse (S is a multiple of the f32 sublane count).
        xf = x3.reshape(tb * s, d_in)
        att3 = jnp.tanh(
            jnp.dot(xf, ww_ref[...], preferred_element_type=jnp.float32) + wb_ref[...]
        ).reshape(tb, s, d_mid)
    else:
        # Keep the contraction 3-D so Mosaic does not materialise a relayout copy.
        att3 = jnp.tanh(
            lax.dot_general(x3, ww_ref[...], (((2,), (0,)), ((), ())),
                            preferred_element_type=jnp.float32)
            + wb_ref[...]
        )

    if d_out == 1:
        # N=1 projection: VPU multiply + lane reduce (skip a degenerate MXU pass).
        score = (
            jnp.sum(att3 * vw_ref[...].reshape(1, 1, d_mid), axis=-1, keepdims=True)
            + vb_ref[...]
        )
    else:
        score = (
            lax.dot_general(att3, vw_ref[...], (((2,), (0,)), ((), ())),
                            preferred_element_type=jnp.float32)
            + vb_ref[...]
        )

    m = jnp.max(score, axis=1, keepdims=True)
    e = jnp.exp(score - m)
    denom = jnp.sum(e, axis=1, keepdims=True)
    inv = pl.reciprocal(denom, approx=True)
    inv = inv * (2.0 - denom * inv)
    o_ref[...] = ((e * inv) * x3).astype(o_ref.dtype)


# --------------------------------------------------------------------------
# Wrapper
# --------------------------------------------------------------------------
def attention_block(features, w_weight, w_bias, v_weight, v_bias, *, block_b=None):
    """features: (B, S, D_in); w_weight: (D_mid, D_in); v_weight: (D_out, D_mid)
    in torch nn.Linear layout.  block_b (if given) must be a multiple of 8 or == B."""
    B, S, D_in = features.shape
    D_mid = w_weight.shape[0]
    D_out = v_weight.shape[0]
    if D_out not in (1, D_in):
        # Same broadcast constraint as the PyTorch module's `weights * features`.
        raise ValueError(f"out_features must be 1 or in_features, got {D_out}")

    target_bytes, vmem_limit, num_cores = _tpu_generation()
    itemsize = features.dtype.itemsize
    headroom = 4 << 20

    SD_in = S * D_in
    SD_mid = S * D_mid
    f32 = jnp.float32

    # Lane-dense flat path is worthwhile while the replicated (kron) weights stay
    # small and the redundant MXU flops stay far below the HBM roofline.
    kron_weight_bytes = (SD_in * SD_mid + SD_mid + SD_mid * SD_in + 1) * 4
    use_flat = (
        D_out == 1
        and kron_weight_bytes <= (4 << 20)
        and SD_mid <= 2048
        and S * D_mid <= 512
    )

    if use_flat:
        # ---- build block-diagonal / lane-expanded weights (tiny, wrapper-side) ----
        eye_s = jnp.eye(S, dtype=f32)
        wblk = jnp.kron(eye_s, w_weight.astype(f32).T)                    # (S*D_in, S*D_mid)
        wbt = jnp.tile(w_bias.astype(f32), S).reshape(1, SD_mid)          # (1, S*D_mid)
        v_block = jnp.kron(v_weight.astype(f32).reshape(D_mid, 1),
                           jnp.ones((1, D_in), f32))                      # (D_mid, D_in)
        vexp = jnp.kron(eye_s, v_block)                                   # (S*D_mid, S*D_in)
        vb2 = v_bias.astype(f32).reshape(1, 1)

        x2 = features.reshape(B, SD_in)                                   # free reshape

        row_bytes = _round_up(SD_in, 128) * itemsize
        data_budget = max(vmem_limit - 2 * kron_weight_bytes - headroom, 1 << 20)
        Tb = block_b if block_b is not None else _pick_block_b(
            B, row_bytes, target_bytes, data_budget, num_cores)
        grid_b = pl.cdiv(B, Tb)

        cost = pl.CostEstimate(
            flops=2 * B * (SD_in * SD_mid + SD_mid * SD_in) + 4 * B * SD_in,
            transcendentals=B * (SD_mid + SD_in),
            bytes_accessed=2 * B * SD_in * itemsize + kron_weight_bytes,
        )

        kernel = functools.partial(_attention_flat_kernel, inv_dup=1.0 / D_in)

        out2 = pl.pallas_call(
            kernel,
            out_shape=jax.ShapeDtypeStruct((B, SD_in), features.dtype),
            grid_spec=pltpu.PrefetchScalarGridSpec(
                num_scalar_prefetch=0,
                grid=(grid_b,),
                in_specs=[
                    pl.BlockSpec((Tb, SD_in), lambda b: (b, 0)),
                    # Grid-invariant weights/biases: constant index maps keep them
                    # VMEM-resident across the whole grid.
                    pl.BlockSpec(wblk.shape, lambda b: (0, 0)),
                    pl.BlockSpec(wbt.shape, lambda b: (0, 0)),
                    pl.BlockSpec(vexp.shape, lambda b: (0, 0)),
                    pl.BlockSpec(vb2.shape, lambda b: (0, 0)),
                ],
                out_specs=pl.BlockSpec((Tb, SD_in), lambda b: (b, 0)),
            ),
            compiler_params=pltpu.CompilerParams(
                dimension_semantics=("parallel",),
                vmem_limit_bytes=vmem_limit,
            ),
            cost_estimate=cost,
        )(x2, wblk, wbt, vexp, vb2)
        return out2.reshape(B, S, D_in)

    # ------------------------------ fallback 3-D path ------------------------------
    ww = w_weight.T                                     # (D_in, D_mid)
    wb = w_bias.reshape(1, D_mid)
    vb = v_bias.reshape(1, D_out)
    vw = v_weight.reshape(1, D_mid) if D_out == 1 else v_weight.T

    weight_bytes = (ww.size + wb.size + vw.size + vb.size) * 4
    row_bytes = S * _round_up(D_in, 128) * itemsize     # lane-padding-aware VMEM footprint
    data_budget = max(vmem_limit - 2 * weight_bytes - headroom, 1 << 20)
    Tb = block_b if block_b is not None else _pick_block_b(
        B, row_bytes, target_bytes, data_budget, num_cores)
    grid_b = pl.cdiv(B, Tb)

    cost = pl.CostEstimate(
        flops=2 * B * S * D_mid * (D_in + D_out) + 4 * B * S * D_in,
        transcendentals=B * S * (D_mid + D_out),
        bytes_accessed=2 * B * S * D_in * itemsize + weight_bytes,
    )

    kernel = functools.partial(_attention_3d_kernel, d_out=D_out)
    return pl.pallas_call(
        kernel,
        out_shape=jax.ShapeDtypeStruct((B, S, D_in), features.dtype),
        grid_spec=pltpu.PrefetchScalarGridSpec(
            num_scalar_prefetch=0,
            grid=(grid_b,),
            in_specs=[
                pl.BlockSpec((Tb, S, D_in), lambda b: (b, 0, 0)),
                pl.BlockSpec(ww.shape, lambda b: (0, 0)),
                pl.BlockSpec(wb.shape, lambda b: (0, 0)),
                pl.BlockSpec(vw.shape, lambda b: (0, 0)),
                pl.BlockSpec(vb.shape, lambda b: (0, 0)),
            ],
            out_specs=pl.BlockSpec((Tb, S, D_in), lambda b: (b, 0, 0)),
        ),
        compiler_params=pltpu.CompilerParams(
            dimension_semantics=("parallel",),
            vmem_limit_bytes=vmem_limit,
        ),
        cost_estimate=cost,
    )(features, ww, wb, vw, vb)


def attention_block_ref(features, w_weight, w_bias, v_weight, v_bias):
    att = jnp.tanh(features @ w_weight.T + w_bias)
    score = att @ v_weight.T + v_bias
    weights = jax.nn.softmax(score, axis=1)
    return weights * features


if __name__ == "__main__":
    key = jax.random.PRNGKey(0)
    B, S = 2, 8
    in_features, middle_features, out_features = 32, 16, 1

    k1, k2, k3, k4, k5 = jax.random.split(key, 5)
    features = jax.random.normal(k1, (B, S, in_features), dtype=jnp.float32)
    # torch nn.Linear layout: weight (out, in), bias (out,)
    w_weight = jax.random.normal(k2, (middle_features, in_features), jnp.float32) * 0.1
    w_bias = jax.random.normal(k3, (middle_features,), jnp.float32) * 0.1
    v_weight = jax.random.normal(k4, (out_features, middle_features), jnp.float32) * 0.1
    v_bias = jax.random.normal(k5, (out_features,), jnp.float32) * 0.1

    out = attention_block(features, w_weight, w_bias, v_weight, v_bias)
    out = jax.block_until_ready(out)

    ref = attention_block_ref(features, w_weight, w_bias, v_weight, v_bias)
    assert out.shape == (B, S, in_features)
    assert jnp.allclose(out, ref, atol=1e-4, rtol=1e-4), "mismatch vs reference"

    print("KERNEL_OK")
</pallas_src>

<mosaic_0001>
module attributes {stable_mosaic.version = 11 : i64} {
  func.func @_attention_flat_kernel(%arg0: i32, %arg1: memref<2x256xf32, #tpu.memory_space<vmem>>, %arg2: memref<256x128xf32, #tpu.memory_space<vmem>>, %arg3: memref<1x128xf32, #tpu.memory_space<vmem>>, %arg4: memref<128x256xf32, #tpu.memory_space<vmem>>, %arg5: memref<1x1xf32, #tpu.memory_space<vmem>>, %arg6: memref<2x256xf32, #tpu.memory_space<vmem>>) attributes {dimension_semantics = [#tpu.dimension_semantics<parallel>], iteration_bounds = array<i64: 1>, scalar_prefetch = 0 : i64, scratch_operands = 0 : i64, tpu.core_type = #tpu.core_type<tc>, window_params = [{transform_indices = @transform_0, window_bounds = array<i64: 2, 256>}, {pipeline_mode = #tpu.pipeline_mode<synchronous>, transform_indices = @transform_1, window_bounds = array<i64: 256, 128>}, {pipeline_mode = #tpu.pipeline_mode<synchronous>, transform_indices = @transform_2, window_bounds = array<i64: 1, 128>}, {pipeline_mode = #tpu.pipeline_mode<synchronous>, transform_indices = @transform_3, window_bounds = array<i64: 128, 256>}, {pipeline_mode = #tpu.pipeline_mode<synchronous>, transform_indices = @transform_4, window_bounds = array<i64: 1, 1>}, {transform_indices = @transform_5, window_bounds = array<i64: 2, 256>}]} {
    %c0 = arith.constant 0 : index
    %c0_0 = arith.constant 0 : index
    %0 = vector.load %arg1[%c0, %c0_0] : memref<2x256xf32, #tpu.memory_space<vmem>>, vector<2x256xf32>
    %c0_1 = arith.constant 0 : index
    %c0_2 = arith.constant 0 : index
    %1 = vector.load %arg2[%c0_1, %c0_2] : memref<256x128xf32, #tpu.memory_space<vmem>>, vector<256x128xf32>
    %cst = arith.constant dense<0.000000e+00> : vector<2x128xf32>
    %2 = tpu.matmul %0, %1, %cst {dimension_numbers = #tpu.dot_dimension_numbers<[1], [0], [0], [1], [0, 0, 1, 1], [], []>} : vector<2x256xf32>, vector<256x128xf32>, vector<2x128xf32> -> vector<2x128xf32>
    %c0_3 = arith.constant 0 : index
    %c0_4 = arith.constant 0 : index
    %3 = vector.load %arg3[%c0_3, %c0_4] : memref<1x128xf32, #tpu.memory_space<vmem>>, vector<1x128xf32>
    %4 = vector.broadcast %3 : vector<1x128xf32> to vector<2x128xf32>
    %5 = arith.addf %2, %4 : vector<2x128xf32>
    %6 = math.tanh %5 : vector<2x128xf32>
    %c0_5 = arith.constant 0 : index
    %c0_6 = arith.constant 0 : index
    %7 = vector.load %arg4[%c0_5, %c0_6] : memref<128x256xf32, #tpu.memory_space<vmem>>, vector<128x256xf32>
    %cst_7 = arith.constant dense<0.000000e+00> : vector<2x256xf32>
    %8 = tpu.matmul %6, %7, %cst_7 {dimension_numbers = #tpu.dot_dimension_numbers<[1], [0], [0], [1], [0, 0, 1, 1], [], []>} : vector<2x128xf32>, vector<128x256xf32>, vector<2x256xf32> -> vector<2x256xf32>
    %c0_8 = arith.constant 0 : index
    %c0_9 = arith.constant 0 : index
    %9 = vector.load %arg5[%c0_8, %c0_9] : memref<1x1xf32, #tpu.memory_space<vmem>>, vector<1x1xf32>
    %10 = vector.broadcast %9 : vector<1x1xf32> to vector<2x256xf32>
    %11 = arith.addf %8, %10 : vector<2x256xf32>
    %cst_10 = arith.constant dense<0xFF800000> : vector<2xf32>
    %12 = vector.multi_reduction <maximumf>, %11, %cst_10 [1] : vector<2x256xf32> to vector<2xf32>
    %13 = vector.shape_cast %12 : vector<2xf32> to vector<2x1xf32>
    %14 = vector.broadcast %13 : vector<2x1xf32> to vector<2x256xf32>
    %15 = arith.subf %11, %14 : vector<2x256xf32>
    %16 = math.exp %15 : vector<2x256xf32>
    %cst_11 = arith.constant dense<0.000000e+00> : vector<2xf32>
    %17 = vector.multi_reduction <add>, %16, %cst_11 [1] : vector<2x256xf32> to vector<2xf32>
    %18 = vector.shape_cast %17 : vector<2xf32> to vector<2x1xf32>
    %cst_12 = arith.constant 3.125000e-02 : f32
    %19 = vector.broadcast %cst_12 : f32 to vector<2x1xf32>
    %20 = arith.mulf %18, %19 : vector<2x1xf32>
    %21 = tpu.reciprocal %20 {approx = true} : vector<2x1xf32> -> vector<2x1xf32>
    %22 = arith.mulf %20, %21 : vector<2x1xf32>
    %cst_13 = arith.constant 2.000000e+00 : f32
    %23 = vector.broadcast %cst_13 : f32 to vector<2x1xf32>
    %24 = arith.subf %23, %22 : vector<2x1xf32>
    %25 = arith.mulf %21, %24 : vector<2x1xf32>
    %26 = vector.broadcast %25 : vector<2x1xf32> to vector<2x256xf32>
    %27 = arith.mulf %16, %26 : vector<2x256xf32>
    %28 = arith.mulf %27, %0 : vector<2x256xf32>
    %c0_14 = arith.constant 0 : index
    %c0_15 = arith.constant 0 : index
    %29 = vector.load %arg6[%c0_14, %c0_15] : memref<2x256xf32, #tpu.memory_space<vmem>>, vector<2x256xf32>
    tpu.vector_store %arg6[%c0_14, %c0_15], %28 {strides = array<i32>} : memref<2x256xf32, #tpu.memory_space<vmem>>, vector<2x256xf32>,
    return
  }
  func.func @transform_0(%arg0: i32) -> (i32, i32) {
    %c0_i32 = arith.constant 0 : i32
    %c0_i32_0 = arith.constant 0 : i32
    return %arg0, %c0_i32 : i32, i32
  }
  func.func @transform_1(%arg0: i32) -> (i32, i32) {
    %c0_i32 = arith.constant 0 : i32
    %c0_i32_0 = arith.constant 0 : i32
    %c0_i32_1 = arith.constant 0 : i32
    return %c0_i32, %c0_i32_0 : i32, i32
  }
  func.func @transform_2(%arg0: i32) -> (i32, i32) {
    %c0_i32 = arith.constant 0 : i32
    %c0_i32_0 = arith.constant 0 : i32
    %c0_i32_1 = arith.constant 0 : i32
    return %c0_i32, %c0_i32_0 : i32, i32
  }
  func.func @transform_3(%arg0: i32) -> (i32, i32) {
    %c0_i32 = arith.constant 0 : i32
    %c0_i32_0 = arith.constant 0 : i32
    %c0_i32_1 = arith.constant 0 : i32
    return %c0_i32, %c0_i32_0 : i32, i32
  }
  func.func @transform_4(%arg0: i32) -> (i32, i32) {
    %c0_i32 = arith.constant 0 : i32
    %c0_i32_0 = arith.constant 0 : i32
    %c0_i32_1 = arith.constant 0 : i32
    return %c0_i32, %c0_i32_0 : i32, i32
  }
  func.func @transform_5(%arg0: i32) -> (i32, i32) {
    %c0_i32 = arith.constant 0 : i32
    %c0_i32_0 = arith.constant 0 : i32
    return %arg0, %c0_i32 : i32, i32
  }
}

</mosaic_0001>

<llo_original>
// kernel: tpu_custom_call.1
$region0: #{tpu_custom_call.1}
  #allocation0 [shape = 'u32[]', space=smem, size = 0x4, offset = 0x4, fixed_abs, tag = 'smem constant byte address 0x4 - core index']
  #allocation1 [shape = 'u32[144,128]{1,0:T(1,128)}', space=vmem, size = 0x12000, scoped, tag = 'internal scratch']
  #allocation2 [shape = 'f32[1,1]{1,0:T(1,128)S(1)}', space=vmem, size = 0x200, scoped, tag = 'scoped memory for tpu_custom_call.1']
  %s0 = inlined_call_operand.hbm [shape: f32[2,256], index: 0, kind: input, shape index: {}]
  %s1 = inlined_call_operand.hbm [shape: f32[256,128], index: 1, kind: input, shape index: {}]
  %s2 = inlined_call_operand.vmem [shape: f32[1,128], index: 2, kind: input, shape index: {}]
  %s3 = inlined_call_operand.hbm [shape: f32[128,256], index: 3, kind: input, shape index: {}]
  %s4 = inlined_call_operand.<no memory space> [shape: f32[1,1], index: 4, kind: input, shape index: {}]
  %s5 = inlined_call_operand.hbm [shape: f32[2,256], index: 5, kind: output, shape index: {}]
  %s6 = sld [smem:[#allocation0]]
  $region42: #{tpu_custom_call.1} parent=0
    _
  %s8 = ssub.s32 1, %s6
  %s9 = scalar_select 0, %s8, %s6
  %v10 = vstv %s4
  %11 = vst [vmem:[#allocation2] sm:$0x1] %v10
  $region1: #{tpu_custom_call.1} parent=0
    #allocation3 [shape = 'u8[2048]{0}', space=vmem, size = 0x800, scoped, tag = 'input window, operand 0, single buffered']
    #allocation4 [shape = 's32[1]{0}', space=sflag, size = 0x4, scoped, tag = 'scoped memory for tpu_custom_call.1']
    #allocation5 [shape = 's32[1]{0}', space=sflag, size = 0x4, scoped, tag = 'scoped memory for tpu_custom_call.1']
    #allocation6 [shape = 'u8[131072]{0}', space=vmem, size = 0x20000, scoped, tag = 'input window, operand 1, single buffered']
    #allocation7 [shape = 's32[1]{0}', space=sflag, size = 0x4, scoped, tag = 'scoped memory for tpu_custom_call.1']
    #allocation8 [shape = 'u8[131072]{0}', space=vmem, size = 0x20000, scoped, tag = 'input window, operand 3, single buffered']
    #allocation9 [shape = 'u8[2048]{0}', space=vmem, size = 0x800, scoped, tag = 'output window, operand 0, single buffered']
    %12 = vsyncpa [#allocation4], 0
    %13 = vsyncpa [#allocation7], 0
    %14 = vsyncpa [#allocation5], 0
    // Predicated region
    $region2: #{tpu_custom_call.1} parent=1 // pred_check
      _
    $region3: #{tpu_custom_call.1} parent=1 // pred_check_branch
      %16 = sbr.rel (0) target = $region5
    $region4: #{tpu_custom_call.1} parent=1 // pred_region
      %s18 = ssub.s32 64, 64
      %19 = vsyncadd [#allocation4], %s18
      %s21 = sshll.u32 [#allocation3], 4
      %s22 = int_to_ptr.vmem [resolvable:$true] %s21
      %24 = dma.hbm_to_vmem [thread:$0]  %s0, 64, %s22, [#allocation4]
    $region5: #{tpu_custom_call.1} parent=1 // pred_fallthru
      _
    // Predicated region
    $region6: #{tpu_custom_call.1} parent=1 // pred_check
      _
    $region7: #{tpu_custom_call.1} parent=1 // pred_check_branch
      %26 = sbr.rel (0) target = $region9
    $region8: #{tpu_custom_call.1} parent=1 // pred_region
      %s28 = ssub.s32 4096, 4096
      %29 = vsyncadd [#allocation7], %s28
      %s30 = sshll.u32 [#allocation6], 4
      %s31 = int_to_ptr.vmem [resolvable:$true] %s30
      %36 = dma.hbm_to_vmem [thread:$0]  %s1, 4096, %s31, [#allocation7], 128, 128, 8
    $region9: #{tpu_custom_call.1} parent=1 // pred_fallthru
      _
    // Predicated region
    $region10: #{tpu_custom_call.1} parent=1 // pred_check
      _
    $region11: #{tpu_custom_call.1} parent=1 // pred_check_branch
      %38 = sbr.rel (0) target = $region13
    $region12: #{tpu_custom_call.1} parent=1 // pred_region
      _
    $region13: #{tpu_custom_call.1} parent=1 // pred_fallthru
      _
    // Predicated region
    $region14: #{tpu_custom_call.1} parent=1 // pred_check
      _
    $region15: #{tpu_custom_call.1} parent=1 // pred_check_branch
      %40 = sbr.rel (0) target = $region17
    $region16: #{tpu_custom_call.1} parent=1 // pred_region
      %s42 = ssub.s32 4096, 4096
      %43 = vsyncadd [#allocation7], %s42
      %s44 = sshll.u32 [#allocation8], 4
      %s45 = int_to_ptr.vmem [resolvable:$true] %s44
      %50 = dma.hbm_to_vmem [thread:$0]  %s3, 4096, %s45, [#allocation7], 256, 256, 16
    $region17: #{tpu_custom_call.1} parent=1 // pred_fallthru
      _
    // Predicated region
    $region18: #{tpu_custom_call.1} parent=1 // pred_check
      _
    $region19: #{tpu_custom_call.1} parent=1 // pred_check_branch
      %52 = sbr.rel (0) target = $region21
    $region20: #{tpu_custom_call.1} parent=1 // pred_region
      _
    $region21: #{tpu_custom_call.1} parent=1 // pred_fallthru
      _
    // Predicated region
    $region22: #{tpu_custom_call.1} parent=1 // pred_check
      _
    $region23: #{tpu_custom_call.1} parent=1 // pred_check_branch
      %54 = sbr.rel (0) target = $region25
    $region24: #{tpu_custom_call.1} parent=1 // pred_region
      %55 = dma.done [#allocation4], 64
    $region25: #{tpu_custom_call.1} parent=1 // pred_fallthru
      _
    // Predicated region
    $region26: #{tpu_custom_call.1} parent=1 // pred_check
      _
    $region27: #{tpu_custom_call.1} parent=1 // pred_check_branch
      %57 = sbr.rel (0) target = $region29
    $region28: #{tpu_custom_call.1} parent=1 // pred_region
      %58 = dma.done [#allocation7], 4096
    $region29: #{tpu_custom_call.1} parent=1 // pred_fallthru
      _
    // Predicated region
    $region30: #{tpu_custom_call.1} parent=1 // pred_check
      _
    $region31: #{tpu_custom_call.1} parent=1 // pred_check_branch
      %60 = sbr.rel (0) target = $region33
    $region32: #{tpu_custom_call.1} parent=1 // pred_region
      %61 = dma.done [#allocation7], 4096
    $region33: #{tpu_custom_call.1} parent=1 // pred_fallthru
      _
    %v62 = vld [vmem:[#allocation3] sm:$0xf]
    %v63 = vld [vmem:[#allocation6] sm:$0xff]
    %v64 = vld [vmem:[#allocation6 + $0x8] sm:$0xff]
    %v65 = vld [vmem:[#allocation6 + $0x10] sm:$0xff]
    %v66 = vld [vmem:[#allocation6 + $0x18] sm:$0xff]
    %v67 = vld [vmem:[#allocation6 + $0x20] sm:$0xff]
    %v68 = vld [vmem:[#allocation6 + $0x28] sm:$0xff]
    %v69 = vld [vmem:[#allocation6 + $0x30] sm:$0xff]
    %v70 = vld [vmem:[#allocation6 + $0x38] sm:$0xff]
    %v71 = vld [vmem:[#allocation6 + $0x40] sm:$0xff]
    %v72 = vld [vmem:[#allocation6 + $0x48] sm:$0xff]
    %v73 = vld [vmem:[#allocation6 + $0x50] sm:$0xff]
    %v74 = vld [vmem:[#allocation6 + $0x58] sm:$0xff]
    %v75 = vld [vmem:[#allocation6 + $0x60] sm:$0xff]
    %v76 = vld [vmem:[#allocation6 + $0x68] sm:$0xff]
    %v77 = vld [vmem:[#allocation6 + $0x70] sm:$0xff]
    %v78 = vld [vmem:[#allocation6 + $0x78] sm:$0xff]
    %v79 = vld [vmem:[#allocation6 + $0x80] sm:$0xff]
    %v80 = vld [vmem:[#allocation6 + $0x88] sm:$0xff]
    %v81 = vld [vmem:[#allocation6 + $0x90] sm:$0xff]
    %v82 = vld [vmem:[#allocation6 + $0x98] sm:$0xff]
    %v83 = vld [vmem:[#allocation6 + $0xa0] sm:$0xff]
    %v84 = vld [vmem:[#allocation6 + $0xa8] sm:$0xff]
    %v85 = vld [vmem:[#allocation6 + $0xb0] sm:$0xff]
    %v86 = vld [vmem:[#allocation6 + $0xb8] sm:$0xff]
    %v87 = vld [vmem:[#allocation6 + $0xc0] sm:$0xff]
    %v88 = vld [vmem:[#allocation6 + $0xc8] sm:$0xff]
    %v89 = vld [vmem:[#allocation6 + $0xd0] sm:$0xff]
    %v90 = vld [vmem:[#allocation6 + $0xd8] sm:$0xff]
    %v91 = vld [vmem:[#allocation6 + $0xe0] sm:$0xff]
    %v92 = vld [vmem:[#allocation6 + $0xe8] sm:$0xff]
    %v93 = vld [vmem:[#allocation6 + $0xf0] sm:$0xff]
    %v94 = vld [vmem:[#allocation6 + $0xf8] sm:$0xff]
    %v95 = vld [vmem:[%s2] sm:$0x1]
    %v97 = vlaneseq
    %v98 = vshrl.u32 %v97, 7
    %v99 = vsub.s32 0, %v98
    %v100 = vrot.slane %v95, %v99
    %v104 = vunpack.c.l.s4 1983009808
    %v105 = vunpack.c.0.s8 %v104
    %v106 = vlaneseq
    %v107 = vshrl.u32 %v106, 7
    %v108 = vsub.s32 %v105, %v107
    %v109 = vrot.slane %v62, %v108
    %v110 = vcombine.high %v109, %v109
    %113 = vmatprep.subr.mxu0 0.0
    %114 = vmatpush1.msra.mxu0 %v63
    %115 = vmatprep.subr.mxu0 0.0
    %116 = vmatpush1.msra.mxu0 %v64
    %117 = vmatprep.subr.mxu0 0.0
    %118 = vmatpush1.msra.mxu0 %v65
    %119 = vmatprep.subr.mxu0 0.0
    %120 = vmatpush1.msra.mxu0 %v66
    %121 = vmatprep.subr.mxu0 0.0
    %122 = vmatpush1.msra.mxu0 %v67
    %123 = vmatprep.subr.mxu0 0.0
    %124 = vmatpush1.msra.mxu0 %v68
    %125 = vmatprep.subr.mxu0 0.0
    %126 = vmatpush1.msra.mxu0 %v69
    %127 = vmatprep.subr.mxu0 0.0
    %128 = vmatpush1.msra.mxu0 %v70
    %129 = vmatprep.subr.mxu0 0.0
    %130 = vmatpush1.msra.mxu0 %v71
    %131 = vmatprep.subr.mxu0 0.0
    %132 = vmatpush1.msra.mxu0 %v72
    %133 = vmatprep.subr.mxu0 0.0
    %134 = vmatpush1.msra.mxu0 %v73
    %135 = vmatprep.subr.mxu0 0.0
    %136 = vmatpush1.msra.mxu0 %v74
    %137 = vmatprep.subr.mxu0 0.0
    %138 = vmatpush1.msra.mxu0 %v75
    %139 = vmatprep.subr.mxu0 0.0
    %140 = vmatpush1.msra.mxu0 %v76
    %141 = vmatprep.subr.mxu0 0.0
    %142 = vmatpush1.msra.mxu0 %v77
    %143 = vmatprep.subr.mxu0 0.0
    %144 = vmatpush1.msra.mxu0 %v78
    %145 = vmatprep.subr.mxu0 0.0
    %146 = vmatpush1.msra.mxu0 %v79
    %147 = vmatprep.subr.mxu0 0.0
    %148 = vmatpush1.msra.mxu0 %v80
    %149 = vmatprep.subr.mxu0 0.0
    %150 = vmatpush1.msra.mxu0 %v81
    %151 = vmatprep.subr.mxu0 0.0
    %152 = vmatpush1.msra.mxu0 %v82
    %153 = vmatprep.subr.mxu0 0.0
    %154 = vmatpush1.msra.mxu0 %v83
    %155 = vmatprep.subr.mxu0 0.0
    %156 = vmatpush1.msra.mxu0 %v84
    %157 = vmatprep.subr.mxu0 0.0
    %158 = vmatpush1.msra.mxu0 %v85
    %159 = vmatprep.subr.mxu0 0.0
    %160 = vmatpush1.msra.mxu0 %v86
    %161 = vmatprep.subr.mxu0 0.0
    %162 = vmatpush1.msra.mxu0 %v87
    %163 = vmatprep.subr.mxu0 0.0
    %164 = vmatpush1.msra.mxu0 %v88
    %165 = vmatprep.subr.mxu0 0.0
    %166 = vmatpush1.msra.mxu0 %v89
    %167 = vmatprep.subr.mxu0 0.0
    %168 = vmatpush1.msra.mxu0 %v90
    %169 = vmatprep.subr.mxu0 0.0
    %170 = vmatpush1.msra.mxu0 %v91
    %171 = vmatprep.subr.mxu0 0.0
    %172 = vmatpush1.msra.mxu0 %v92
    %173 = vmatprep.subr.mxu0 0.0
    %174 = vmatpush1.msra.mxu0 %v93
    %175 = vmatprep.subr.mxu0 0.0
    %176 = vmatpush1.msra.mxu0 %v94
    %177 = vmatprep.mubr.f32.mxu0 %v110
    %178 = vmatmul.mubr.f32.gmra.mrb[0].mxu0 %v109
    %v179 = vpop.f32.mrb[0].mxu0
    %v180 = vadd.f32 %v100, %v179
    %v181 = vpop.f32.mrb[0].mxu0
    %182 = vdwg.mxu0
    %v183 = vtanh.pop %v180
    %v184 = vld [vmem:[#allocation8] sm:$0xff]
    %v185 = vld [vmem:[#allocation8 + $0x8] sm:$0xff]
    %v186 = vld [vmem:[#allocation8 + $0x10] sm:$0xff]
    %v187 = vld [vmem:[#allocation8 + $0x18] sm:$0xff]
    %v188 = vld [vmem:[#allocation8 + $0x20] sm:$0xff]
    %v189 = vld [vmem:[#allocation8 + $0x28] sm:$0xff]
    %v190 = vld [vmem:[#allocation8 + $0x30] sm:$0xff]
    %v191 = vld [vmem:[#allocation8 + $0x38] sm:$0xff]
    %v192 = vld [vmem:[#allocation8 + $0x40] sm:$0xff]
    %v193 = vld [vmem:[#allocation8 + $0x48] sm:$0xff]
    %v194 = vld [vmem:[#allocation8 + $0x50] sm:$0xff]
    %v195 = vld [vmem:[#allocation8 + $0x58] sm:$0xff]
    %v196 = vld [vmem:[#allocation8 + $0x60] sm:$0xff]
    %v197 = vld [vmem:[#allocation8 + $0x68] sm:$0xff]
    %v198 = vld [vmem:[#allocation8 + $0x70] sm:$0xff]
    %v199 = vld [vmem:[#allocation8 + $0x78] sm:$0xff]
    %v200 = vld [vmem:[#allocation8 + $0x80] sm:$0xff]
    %v201 = vld [vmem:[#allocation8 + $0x88] sm:$0xff]
    %v202 = vld [vmem:[#allocation8 + $0x90] sm:$0xff]
    %v203 = vld [vmem:[#allocation8 + $0x98] sm:$0xff]
    %v204 = vld [vmem:[#allocation8 + $0xa0] sm:$0xff]
    %v205 = vld [vmem:[#allocation8 + $0xa8] sm:$0xff]
    %v206 = vld [vmem:[#allocation8 + $0xb0] sm:$0xff]
    %v207 = vld [vmem:[#allocation8 + $0xb8] sm:$0xff]
    %v208 = vld [vmem:[#allocation8 + $0xc0] sm:$0xff]
    %v209 = vld [vmem:[#allocation8 + $0xc8] sm:$0xff]
    %v210 = vld [vmem:[#allocation8 + $0xd0] sm:$0xff]
    %v211 = vld [vmem:[#allocation8 + $0xd8] sm:$0xff]
    %v212 = vld [vmem:[#allocation8 + $0xe0] sm:$0xff]
    %v213 = vld [vmem:[#allocation8 + $0xe8] sm:$0xff]
    %v214 = vld [vmem:[#allocation8 + $0xf0] sm:$0xff]
    %v215 = vld [vmem:[#allocation8 + $0xf8] sm:$0xff]
    %v216 = vld [vmem:[#allocation2] sm:$0x1]
    %v218 = vlaneseq
    %v219 = vshrl.u32 %v218, 7
    %v220 = vsub.s32 0, %v219
    %v221 = vrot.slane %v216, %v220
    %222 = vset.pattern.permute.xlu0 0
    %223 = vperm.xlu0 %222, %v221
    %v224 = vpop.permute.xlu0 %223
    %226 = vmatprep.subr.mxu0 %v185
    %227 = vmatpush1.msra.mxu0 %v184
    %228 = vmatprep.subr.mxu0 %v187
    %229 = vmatpush1.msra.mxu0 %v186
    %230 = vmatprep.subr.mxu0 %v189
    %231 = vmatpush1.msra.mxu0 %v188
    %232 = vmatprep.subr.mxu0 %v191
    %233 = vmatpush1.msra.mxu0 %v190
    %234 = vmatprep.subr.mxu0 %v193
    %235 = vmatpush1.msra.mxu0 %v192
    %236 = vmatprep.subr.mxu0 %v195
    %237 = vmatpush1.msra.mxu0 %v194
    %238 = vmatprep.subr.mxu0 %v197
    %239 = vmatpush1.msra.mxu0 %v196
    %240 = vmatprep.subr.mxu0 %v199
    %241 = vmatpush1.msra.mxu0 %v198
    %242 = vmatprep.subr.mxu0 %v201
    %243 = vmatpush1.msra.mxu0 %v200
    %244 = vmatprep.subr.mxu0 %v203
    %245 = vmatpush1.msra.mxu0 %v202
    %246 = vmatprep.subr.mxu0 %v205
    %247 = vmatpush1.msra.mxu0 %v204
    %248 = vmatprep.subr.mxu0 %v207
    %249 = vmatpush1.msra.mxu0 %v206
    %250 = vmatprep.subr.mxu0 %v209
    %251 = vmatpush1.msra.mxu0 %v208
    %252 = vmatprep.subr.mxu0 %v211
    %253 = vmatpush1.msra.mxu0 %v210
    %254 = vmatprep.subr.mxu0 %v213
    %255 = vmatpush1.msra.mxu0 %v212
    %256 = vmatprep.subr.mxu0 %v215
    %257 = vmatpush1.msra.mxu0 %v214
    %258 = vmatprep.subr.mxu0 0.0
    %259 = vmatpush1.msra.mxu0 0.0
    %260 = vmatprep.subr.mxu0 0.0
    %261 = vmatpush1.msra.mxu0 0.0
    %262 = vmatprep.subr.mxu0 0.0
    %263 = vmatpush1.msra.mxu0 0.0
    %264 = vmatprep.subr.mxu0 0.0
    %265 = vmatpush1.msra.mxu0 0.0
    %266 = vmatprep.subr.mxu0 0.0
    %267 = vmatpush1.msra.mxu0 0.0
    %268 = vmatprep.subr.mxu0 0.0
    %269 = vmatpush1.msra.mxu0 0.0
    %270 = vmatprep.subr.mxu0 0.0
    %271 = vmatpush1.msra.mxu0 0.0
    %272 = vmatprep.subr.mxu0 0.0
    %273 = vmatpush1.msra.mxu0 0.0
    %274 = vmatprep.subr.mxu0 0.0
    %275 = vmatpush1.msra.mxu0 0.0
    %276 = vmatprep.subr.mxu0 0.0
    %277 = vmatpush1.msra.mxu0 0.0
    %278 = vmatprep.subr.mxu0 0.0
    %279 = vmatpush1.msra.mxu0 0.0
    %280 = vmatprep.subr.mxu0 0.0
    %281 = vmatpush1.msra.mxu0 0.0
    %282 = vmatprep.subr.mxu0 0.0
    %283 = vmatpush1.msra.mxu0 0.0
    %284 = vmatprep.subr.mxu0 0.0
    %285 = vmatpush1.msra.mxu0 0.0
    %286 = vmatprep.subr.mxu0 0.0
    %287 = vmatpush1.msra.mxu0 0.0
    %288 = vmatprep.subr.mxu0 0.0
    %289 = vmatpush1.msra.mxu0 0.0
    %290 = vmatprep.mubr.f32.mxu0 0.0
    %291 = vmatmul.mubr.f32.gmra.mrb[0].mxu0 %v183
    %v292 = vpop.f32.mrb[0].mxu0
    %v293 = vadd.f32 %v224, %v292
    %v294 = vpop.f32.mrb[0].mxu0
    %v295 = vadd.f32 %v224, %v294
    %296 = vdwg.mxu0
    %vm297 = vcmask 1041408
    %v298 = vsel %vm297, %v293, -inf
    %v299 = vsel %vm297, %v295, -inf
    %v300 = vmax.f32 %v298, %v299
    %301 = vmax.xlane.f32.xlu0 %v300
    %v302 = vpop.xlane.xlu0 %301
    %v303 = vsub.f32 %v293, %v302
    %v304 = vsub.f32 %v295, %v302
    %v305 = vmul.f32 %v303, 1.442695
    %v306 = vpow.pop %v305
    %v307 = vmul.f32 %v304, 1.442695
    %v308 = vpow.pop %v307
    %v309 = vsel %vm297, %v306, 0.0
    %v310 = vsel %vm297, %v308, 0.0
    %v311 = vadd.f32 %v309, %v310
    %312 = vadd.xlane.f32.xlu0 %v311
    %v313 = vpop.xlane.xlu0 %312
    %v314 = vmul.f32 %v313, 0.03125
    %v315 = vrcp.pop %v314
    %v316 = vmul.f32 %v314, %v315
    %v317 = vsub.f32 2.0, %v316
    %v318 = vmul.f32 %v315, %v317
    %v319 = vmul.f32 %v306, %v318
    %v320 = vmul.f32 %v308, %v318
    %v321 = vmul.f32 %v319, %v109
    %v322 = vmul.f32 %v320, %v110
    %v325 = vcombine.low %v321, %v322
    %v327 = vunpack.c.l.s4 1983009808
    %v328 = vunpack.c.0.s8 %v327
    %v329 = vlaneseq
    %v330 = vshrl.u32 %v329, 7
    %v331 = vsub.s32 %v328, %v330
    %v332 = vrot.slane %v325, %v331
    %334 = vst [vmem:[#allocation9] sm:$0xf] %v332
    // Predicated region
    $region34: #{tpu_custom_call.1} parent=1 // pred_check
      _
    $region35: #{tpu_custom_call.1} parent=1 // pred_check_branch
      %336 = sbr.rel (0) target = $region37
    $region36: #{tpu_custom_call.1} parent=1 // pred_region
      %s338 = ssub.s32 64, 64
      %339 = vsyncadd [#allocation5], %s338
      %s341 = sshll.u32 [#allocation9], 4
      %s342 = int_to_ptr.vmem [resolvable:$true] %s341
      %344 = dma.vmem_to_hbm [thread:$0]  %s342, 64, %s5, [#allocation5]
    $region37: #{tpu_custom_call.1} parent=1 // pred_fallthru
      _
    // Predicated region
    $region38: #{tpu_custom_call.1} parent=1 // pred_check
      _
    $region39: #{tpu_custom_call.1} parent=1 // pred_check_branch
      %346 = sbr.rel (0) target = $region41
    $region40: #{tpu_custom_call.1} parent=1 // pred_region
      %347 = dma.done [#allocation5], 64
    $region41: #{tpu_custom_call.1} parent=1 // pred_fallthru
      _
    %348 = vsyncpa [#allocation4], 1
    %349 = vsyncpa [#allocation7], 1
    %350 = vsyncpa [#allocation5], 1

</llo_original>
